<compile_context>
chip_gen: v5e
topology: v5e:2x2
jax: 0.10.0
libtpu: 0.0.40
codegen_flags: <defaults>
</compile_context>

<pallas_src>
import math

import jax
import jax.numpy as jnp
from jax.experimental import pallas as pl
from jax.experimental.pallas import tpu as pltpu

BN_EPS = 1e-5
_LANE = 128
_VMEM_LIMIT = 32 * 1024 * 1024


# ---------------------------------------------------------------------------
# Small helpers
# ---------------------------------------------------------------------------
def _round_up(x, m):
    return (x + m - 1) // m * m


def _pad2(x, rows, cols):
    return jnp.pad(x, ((0, rows - x.shape[0]), (0, cols - x.shape[1])))


def _compiler_params(semantics):
    return pltpu.CompilerParams(dimension_semantics=semantics,
                                vmem_limit_bytes=_VMEM_LIMIT)


# ---------------------------------------------------------------------------
# Kernels
# ---------------------------------------------------------------------------
def _proj_kernel(x_ref, w_ref, b_ref, zl_ref, zrb_ref):
    # Fused projection: z = X @ [Wl | Wr]  (one MXU matmul, f32 accumulation).
    z = jnp.dot(x_ref[...], w_ref[...], preferred_element_type=jnp.float32)
    h = zl_ref.shape[1]
    zl_ref[...] = z[:, :h].astype(jnp.bfloat16)       # bf16 operand for A @ z_l
    zrb_ref[...] = z[:, h:] + b_ref[...]              # self term + bias kept in f32


def _make_agg_hidden_kernel(n_valid, tile_m):
    """h = A @ z_l + z_rb over an (i, k) grid; also emits masked per-tile
    sum / sum-of-squares for the global (two-phase) BatchNorm statistics."""
    def kernel(a_ref, zl_ref, zrb_ref, h_ref, stats_ref, acc_ref):
        # All pallas grid queries hoisted to the top level of the kernel body
        # (never inside a pl.when body) so they lower everywhere.
        k = pl.program_id(1)
        k_last = pl.num_programs(1) - 1
        row_base = pl.program_id(0) * tile_m

        @pl.when(k == 0)
        def _():
            acc_ref[...] = jnp.zeros_like(acc_ref)

        acc_ref[...] += jnp.dot(a_ref[...], zl_ref[...],
                                preferred_element_type=jnp.float32)

        @pl.when(k == k_last)
        def _():
            h = acc_ref[...] + zrb_ref[...]
            h_ref[...] = h
            hp = h.shape[1]
            # mask padded node rows out of the BatchNorm statistics
            row = jax.lax.broadcasted_iota(jnp.int32, h.shape, 0)
            valid = (row + row_base) < n_valid
            hm = jnp.where(valid, h, 0.0)
            s1 = jnp.sum(hm, axis=0, keepdims=True)          # [1, hp]
            s2 = jnp.sum(hm * hm, axis=0, keepdims=True)     # [1, hp]
            srow = jax.lax.broadcasted_iota(jnp.int32, (8, hp), 0)
            stats_ref[...] = (jnp.where(srow == 0, s1, 0.0)
                              + jnp.where(srow == 1, s2, 0.0))
    return kernel


def _bn_relu_kernel(h_ref, scale_ref, shift_ref, o_ref):
    # BatchNorm (pre-folded scale/shift) + ReLU; dropout is identity (eval).
    o_ref[...] = jnp.maximum(h_ref[...] * scale_ref[...] + shift_ref[...], 0.0)


def _make_agg_logsoftmax_kernel(n_classes):
    def kernel(a_ref, zl_ref, zrb_ref, o_ref, acc_ref):
        k = pl.program_id(1)
        k_last = pl.num_programs(1) - 1

        @pl.when(k == 0)
        def _():
            acc_ref[...] = jnp.zeros_like(acc_ref)

        acc_ref[...] += jnp.dot(a_ref[...], zl_ref[...],
                                preferred_element_type=jnp.float32)

        @pl.when(k == k_last)
        def _():
            h = acc_ref[...] + zrb_ref[...]
            lane = jax.lax.broadcasted_iota(jnp.int32, h.shape, 1)
            hm = jnp.where(lane < n_classes, h, -1e30)   # mask padded class lanes
            m = jnp.max(hm, axis=1, keepdims=True)
            lse = jnp.log(jnp.sum(jnp.exp(hm - m), axis=1, keepdims=True)) + m
            o_ref[...] = hm - lse
    return kernel


# ---------------------------------------------------------------------------
# pallas_call wrappers
# ---------------------------------------------------------------------------
def _proj(x, w_cat, b, tile_m):
    n_pad, f_in = x.shape
    h2 = w_cat.shape[1]
    h = h2 // 2
    grid = (n_pad // tile_m,)
    return pl.pallas_call(
        _proj_kernel,
        out_shape=(jax.ShapeDtypeStruct((n_pad, h), jnp.bfloat16),
                   jax.ShapeDtypeStruct((n_pad, h), jnp.float32)),
        grid_spec=pltpu.PrefetchScalarGridSpec(
            num_scalar_prefetch=0, grid=grid,
            in_specs=[pl.BlockSpec((tile_m, f_in), lambda i: (i, 0)),
                      pl.BlockSpec((f_in, h2), lambda i: (0, 0)),
                      pl.BlockSpec((1, h), lambda i: (0, 0))],
            out_specs=(pl.BlockSpec((tile_m, h), lambda i: (i, 0)),
                       pl.BlockSpec((tile_m, h), lambda i: (i, 0)))),
        compiler_params=_compiler_params(("parallel",)),
    )(x, w_cat, b)


def _agg_hidden(a_bf16, zl, zrb, n_valid, tile_m, tile_k):
    n_pad = a_bf16.shape[0]
    h = zl.shape[1]
    grid = (n_pad // tile_m, n_pad // tile_k)
    return pl.pallas_call(
        _make_agg_hidden_kernel(n_valid, tile_m),
        out_shape=(jax.ShapeDtypeStruct((n_pad, h), jnp.float32),
                   jax.ShapeDtypeStruct((8 * grid[0], h), jnp.float32)),
        grid_spec=pltpu.PrefetchScalarGridSpec(
            num_scalar_prefetch=0, grid=grid,
            in_specs=[pl.BlockSpec((tile_m, tile_k), lambda i, k: (i, k)),
                      pl.BlockSpec((tile_k, h), lambda i, k: (k, 0)),
                      pl.BlockSpec((tile_m, h), lambda i, k: (i, 0))],
            out_specs=(pl.BlockSpec((tile_m, h), lambda i, k: (i, 0)),
                       pl.BlockSpec((8, h), lambda i, k: (i, 0))),
            scratch_shapes=[pltpu.VMEM((tile_m, h), jnp.float32)]),
        compiler_params=_compiler_params(("parallel", "arbitrary")),
    )(a_bf16, zl, zrb)


def _bn_relu(h_pre, scale, shift, tile_m):
    n_pad, h = h_pre.shape
    grid = (n_pad // tile_m,)
    return pl.pallas_call(
        _bn_relu_kernel,
        out_shape=jax.ShapeDtypeStruct((n_pad, h), jnp.float32),
        grid_spec=pltpu.PrefetchScalarGridSpec(
            num_scalar_prefetch=0, grid=grid,
            in_specs=[pl.BlockSpec((tile_m, h), lambda i: (i, 0)),
                      pl.BlockSpec((1, h), lambda i: (0, 0)),
                      pl.BlockSpec((1, h), lambda i: (0, 0))],
            out_specs=pl.BlockSpec((tile_m, h), lambda i: (i, 0))),
        compiler_params=_compiler_params(("parallel",)),
    )(h_pre, scale, shift)


def _agg_logsoftmax(a_bf16, zl, zrb, n_classes, tile_m, tile_k):
    n_pad = a_bf16.shape[0]
    c = zl.shape[1]
    grid = (n_pad // tile_m, n_pad // tile_k)
    return pl.pallas_call(
        _make_agg_logsoftmax_kernel(n_classes),
        out_shape=jax.ShapeDtypeStruct((n_pad, c), jnp.float32),
        grid_spec=pltpu.PrefetchScalarGridSpec(
            num_scalar_prefetch=0, grid=grid,
            in_specs=[pl.BlockSpec((tile_m, tile_k), lambda i, k: (i, k)),
                      pl.BlockSpec((tile_k, c), lambda i, k: (k, 0)),
                      pl.BlockSpec((tile_m, c), lambda i, k: (i, 0))],
            out_specs=pl.BlockSpec((tile_m, c), lambda i, k: (i, 0)),
            scratch_shapes=[pltpu.VMEM((tile_m, c), jnp.float32)]),
        compiler_params=_compiler_params(("parallel", "arbitrary")),
    )(a_bf16, zl, zrb)


# ---------------------------------------------------------------------------
# Plain-JAX glue: adjacency, parameters, layer stacking
# ---------------------------------------------------------------------------
def build_mean_adjacency(edge_index, num_nodes):
    # TODO(synk): at real Elliptic scale the dense N x N adjacency must become
    # block-sparse tiles (skip all-zero A tiles) or gather/segment-mean
    # aggregation with scalar-prefetched neighbor indices.
    src, dst = edge_index[0], edge_index[1]
    adj = jnp.zeros((num_nodes, num_nodes), jnp.float32).at[dst, src].add(1.0)
    deg = jnp.sum(adj, axis=1, keepdims=True)
    return adj / jnp.maximum(deg, 1.0)


def init_params(key, num_features, hidden_channels, num_classes, num_layers):
    if num_layers > 1:
        dims = [num_features] + [hidden_channels] * (num_layers - 1) + [num_classes]
    else:
        dims = [num_features, num_classes]
    params = []
    for li in range(len(dims) - 1):
        f_in, f_out = dims[li], dims[li + 1]
        key, k1, k2, k3 = jax.random.split(key, 4)
        scale = 1.0 / jnp.sqrt(jnp.float32(f_in))
        wl = jax.random.uniform(k1, (f_out, f_in), jnp.float32, -scale, scale)
        wr = jax.random.uniform(k2, (f_out, f_in), jnp.float32, -scale, scale)
        b = jax.random.uniform(k3, (1, f_out), jnp.float32, -scale, scale)
        layer = {"wl_t": wl.T, "wr_t": wr.T, "b": b}
        if li < len(dims) - 2:  # hidden layers carry BatchNorm params
            layer["gamma"] = jnp.ones((1, f_out), jnp.float32)
            layer["beta"] = jnp.zeros((1, f_out), jnp.float32)
        params.append(layer)
    return params


def _pad_layer_params(layer, f_in_pad, f_out_pad):
    wl = _pad2(layer["wl_t"], f_in_pad, f_out_pad)
    wr = _pad2(layer["wr_t"], f_in_pad, f_out_pad)
    padded = {"w_cat": jnp.concatenate([wl, wr], axis=1),
              "b": _pad2(layer["b"], 1, f_out_pad)}
    if "gamma" in layer:
        padded["gamma"] = _pad2(layer["gamma"], 1, f_out_pad)
        padded["beta"] = _pad2(layer["beta"], 1, f_out_pad)
    return padded


def graphsage_forward(params, x, adj, *, tile_m=128, tile_k=128):
    assert tile_m % 8 == 0 and tile_k % 128 == 0
    n, f = x.shape
    n_pad = _round_up(n, math.lcm(tile_m, tile_k))
    f_pad = _round_up(f, _LANE)

    # Cast A to bf16 once; it is reused by every layer.
    a_bf16 = _pad2(adj, n_pad, n_pad).astype(jnp.bfloat16)
    h = _pad2(x, n_pad, f_pad)
    f_in_pad = f_pad

    # TODO(synk): the layer loop could be fused into one pallas_call so A is
    # streamed from HBM once instead of once per layer.
    for layer in params[:-1]:
        f_out_pad = _round_up(layer["wl_t"].shape[1], _LANE)
        pp = _pad_layer_params(layer, f_in_pad, f_out_pad)
        zl, zrb = _proj(h, pp["w_cat"], pp["b"], tile_m)
        h_pre, stats = _agg_hidden(a_bf16, zl, zrb, n, tile_m, tile_k)
        # Finalize the two-phase BatchNorm reduction (tiny [H]-sized math).
        stats = stats.reshape(-1, 8, f_out_pad)
        mean = jnp.sum(stats[:, 0, :], axis=0) / n
        var = jnp.maximum(jnp.sum(stats[:, 1, :], axis=0) / n - mean * mean, 0.0)
        scale = pp["gamma"] * jax.lax.rsqrt(var + BN_EPS)
        shift = pp["beta"] - mean * scale
        h = _bn_relu(h_pre, scale, shift, tile_m)   # dropout = identity (eval)
        f_in_pad = f_out_pad

    last = params[-1]
    n_classes = last["wl_t"].shape[1]
    c_pad = _round_up(n_classes, _LANE)
    pp = _pad_layer_params(last, f_in_pad, c_pad)
    zl, zrb = _proj(h, pp["w_cat"], pp["b"], tile_m)
    out = _agg_logsoftmax(a_bf16, zl, zrb, n_classes, tile_m, tile_k)
    return out[:n, :n_classes]


def graphsage_forward_ref(params, x, adj):
    """Pure-JAX reference mirroring the kernel math (bf16 A / z_l operands,
    f32 accumulation): the module's forward with eval-mode dropout and
    training-mode BatchNorm batch statistics."""
    n = x.shape[0]
    a_bf16 = adj.astype(jnp.bfloat16)
    hi = jax.lax.Precision.HIGHEST
    h = x
    for layer in params[:-1]:
        zl = jnp.dot(h, layer["wl_t"], precision=hi).astype(jnp.bfloat16)
        zrb = jnp.dot(h, layer["wr_t"], precision=hi) + layer["b"]
        hp = jnp.dot(a_bf16, zl, preferred_element_type=jnp.float32) + zrb
        mean = jnp.sum(hp, axis=0) / n
        var = jnp.maximum(jnp.sum(hp * hp, axis=0) / n - mean * mean, 0.0)
        scale = layer["gamma"] * jax.lax.rsqrt(var + BN_EPS)
        shift = layer["beta"] - mean * scale
        h = jnp.maximum(hp * scale + shift, 0.0)
    last = params[-1]
    zl = jnp.dot(h, last["wl_t"], precision=hi).astype(jnp.bfloat16)
    zrb = jnp.dot(h, last["wr_t"], precision=hi) + last["b"]
    hp = jnp.dot(a_bf16, zl, preferred_element_type=jnp.float32) + zrb
    return jax.nn.log_softmax(hp, axis=1)


if __name__ == "__main__":
    # Small shapes consistent with EllipticBitcoinDataset semantics:
    #   num_features = 165, num_classes = 2, hidden_channels = 32, num_layers = 3.
    # N_NODES is deliberately not a multiple of 128 so row padding/masking and a
    # multi-step (3 x 3) grid are both exercised.
    N_NODES, N_EDGES = 300, 1200
    NUM_FEATURES, NUM_CLASSES = 165, 2
    HIDDEN, NUM_LAYERS = 32, 3

    key = jax.random.PRNGKey(0)
    kx, ksrc, kdst, kparam = jax.random.split(key, 4)

    x = jax.random.normal(kx, (N_NODES, NUM_FEATURES), jnp.float32)
    edge_index = jnp.stack([
        jax.random.randint(ksrc, (N_EDGES,), 0, N_NODES),
        jax.random.randint(kdst, (N_EDGES,), 0, N_NODES),
    ], axis=0)

    adj = build_mean_adjacency(edge_index, N_NODES)
    params = init_params(kparam, NUM_FEATURES, HIDDEN, NUM_CLASSES, NUM_LAYERS)

    out = jax.block_until_ready(graphsage_forward(params, x, adj))
    ref = graphsage_forward_ref(params, x, adj)

    assert out.shape == (N_NODES, NUM_CLASSES)
    assert bool(jnp.allclose(out, ref, atol=2e-2, rtol=2e-2)), \
        "mismatch vs JAX reference"

    print("KERNEL_OK")
</pallas_src>

<mosaic_0001>
module attributes {stable_mosaic.version = 11 : i64} {
  func.func @_proj_kernel(%arg0: i32, %arg1: memref<128x256xf32, #tpu.memory_space<vmem>>, %arg2: memref<256x256xf32, #tpu.memory_space<vmem>>, %arg3: memref<1x128xf32, #tpu.memory_space<vmem>>, %arg4: memref<128x128xbf16, #tpu.memory_space<vmem>>, %arg5: memref<128x128xf32, #tpu.memory_space<vmem>>) attributes {dimension_semantics = [#tpu.dimension_semantics<parallel>], iteration_bounds = array<i64: 3>, scalar_prefetch = 0 : i64, scratch_operands = 0 : i64, tpu.core_type = #tpu.core_type<tc>, window_params = [{transform_indices = @transform_0, window_bounds = array<i64: 128, 256>}, {pipeline_mode = #tpu.pipeline_mode<synchronous>, transform_indices = @transform_1, window_bounds = array<i64: 256, 256>}, {pipeline_mode = #tpu.pipeline_mode<synchronous>, transform_indices = @transform_2, window_bounds = array<i64: 1, 128>}, {transform_indices = @transform_3, window_bounds = array<i64: 128, 128>}, {transform_indices = @transform_4, window_bounds = array<i64: 128, 128>}]} {
    %c0 = arith.constant 0 : index
    %c0_0 = arith.constant 0 : index
    %0 = vector.load %arg1[%c0, %c0_0] : memref<128x256xf32, #tpu.memory_space<vmem>>, vector<128x256xf32>
    %c0_1 = arith.constant 0 : index
    %c0_2 = arith.constant 0 : index
    %1 = vector.load %arg2[%c0_1, %c0_2] : memref<256x256xf32, #tpu.memory_space<vmem>>, vector<256x256xf32>
    %cst = arith.constant dense<0.000000e+00> : vector<128x256xf32>
    %2 = tpu.matmul %0, %1, %cst {dimension_numbers = #tpu.dot_dimension_numbers<[1], [0], [0], [1], [0, 0, 1, 1], [], []>} : vector<128x256xf32>, vector<256x256xf32>, vector<128x256xf32> -> vector<128x256xf32>
    %3 = vector.extract_strided_slice %2 {offsets = [0, 0], sizes = [128, 128], strides = [1, 1]} : vector<128x256xf32> to vector<128x128xf32>
    %4 = arith.truncf %3 : vector<128x128xf32> to vector<128x128xbf16>
    %c0_3 = arith.constant 0 : index
    %c0_4 = arith.constant 0 : index
    %5 = vector.load %arg4[%c0_3, %c0_4] : memref<128x128xbf16, #tpu.memory_space<vmem>>, vector<128x128xbf16>
    tpu.vector_store %arg4[%c0_3, %c0_4], %4 {strides = array<i32>} : memref<128x128xbf16, #tpu.memory_space<vmem>>, vector<128x128xbf16>,
    %6 = vector.extract_strided_slice %2 {offsets = [0, 128], sizes = [128, 128], strides = [1, 1]} : vector<128x256xf32> to vector<128x128xf32>
    %c0_5 = arith.constant 0 : index
    %c0_6 = arith.constant 0 : index
    %7 = vector.load %arg3[%c0_5, %c0_6] : memref<1x128xf32, #tpu.memory_space<vmem>>, vector<1x128xf32>
    %8 = vector.broadcast %7 : vector<1x128xf32> to vector<128x128xf32>
    %9 = arith.addf %6, %8 : vector<128x128xf32>
    %c0_7 = arith.constant 0 : index
    %c0_8 = arith.constant 0 : index
    %10 = vector.load %arg5[%c0_7, %c0_8] : memref<128x128xf32, #tpu.memory_space<vmem>>, vector<128x128xf32>
    tpu.vector_store %arg5[%c0_7, %c0_8], %9 {strides = array<i32>} : memref<128x128xf32, #tpu.memory_space<vmem>>, vector<128x128xf32>,
    return
  }
  func.func @transform_0(%arg0: i32) -> (i32, i32) {
    %c0_i32 = arith.constant 0 : i32
    %c0_i32_0 = arith.constant 0 : i32
    return %arg0, %c0_i32 : i32, i32
  }
  func.func @transform_1(%arg0: i32) -> (i32, i32) {
    %c0_i32 = arith.constant 0 : i32
    %c0_i32_0 = arith.constant 0 : i32
    %c0_i32_1 = arith.constant 0 : i32
    return %c0_i32, %c0_i32_0 : i32, i32
  }
  func.func @transform_2(%arg0: i32) -> (i32, i32) {
    %c0_i32 = arith.constant 0 : i32
    %c0_i32_0 = arith.constant 0 : i32
    %c0_i32_1 = arith.constant 0 : i32
    return %c0_i32, %c0_i32_0 : i32, i32
  }
  func.func @transform_3(%arg0: i32) -> (i32, i32) {
    %c0_i32 = arith.constant 0 : i32
    %c0_i32_0 = arith.constant 0 : i32
    return %arg0, %c0_i32 : i32, i32
  }
  func.func @transform_4(%arg0: i32) -> (i32, i32) {
    %c0_i32 = arith.constant 0 : i32
    %c0_i32_0 = arith.constant 0 : i32
    return %arg0, %c0_i32 : i32, i32
  }
}

</mosaic_0001>

<llo_original>
// kernel: tpu_custom_call.1
$region0: #{tpu_custom_call.1}
  #allocation0 [shape = 'u32[]', space=smem, size = 0x4, offset = 0x4, fixed_abs, tag = 'smem constant byte address 0x4 - core index']
  #allocation1 [shape = 'u32[72,128]{1,0:T(1,128)}', space=vmem, size = 0x9000, scoped, tag = 'internal scratch']
  %s0 = inlined_call_operand.hbm [shape: f32[384,256], index: 0, kind: input, shape index: {}]
  %s1 = inlined_call_operand.hbm [shape: f32[256,256], index: 1, kind: input, shape index: {}]
  %s2 = inlined_call_operand.vmem [shape: f32[1,128], index: 2, kind: input, shape index: {}]
  %s3 = inlined_call_operand.hbm [shape: bf16[384,128], index: 3, kind: output, shape index: {0}]
  %s4 = inlined_call_operand.hbm [shape: f32[384,128], index: 4, kind: output, shape index: {1}]
  %5 = xla_tuple %s3, %s4
  %s6 = sld [smem:[#allocation0]]
  $region61: #{tpu_custom_call.1} parent=0
    _
  %s8 = ssub.s32 1, %s6
  %s9 = scalar_select 0, %s8, %s6
  $region1: #{tpu_custom_call.1} parent=0
    #allocation2 [shape = 'u8[262144]{0}', space=vmem, size = 0x40000, scoped, tag = 'input window, operand 0']
    #allocation3 [shape = 's32[2]{0}', space=sflag, size = 0x8, scoped, tag = 'scoped memory for tpu_custom_call.1']
    #allocation4 [shape = 's32[2]{0}', space=sflag, size = 0x8, scoped, tag = 'scoped memory for tpu_custom_call.1']
    #allocation5 [shape = 'u8[262144]{0}', space=vmem, size = 0x40000, scoped, tag = 'input window, operand 1, single buffered']
    #allocation6 [shape = 's32[1]{0}', space=sflag, size = 0x4, scoped, tag = 'scoped memory for tpu_custom_call.1']
    #allocation7 [shape = 'u8[65536]{0}', space=vmem, size = 0x10000, scoped, tag = 'output window, operand 0']
    #allocation8 [shape = 'u8[131072]{0}', space=vmem, size = 0x20000, scoped, tag = 'output window, operand 1']
    #allocation9 [shape = 's32[2]{0}', space=sflag, size = 0x8, scoped, tag = 'scoped memory for tpu_custom_call.1']
    %10 = vsyncpa [#allocation3], 0
    %s11 = scalar_lea.sflag [#allocation3], 1
    %12 = vsyncpa %s11, 0
    %13 = vsyncpa [#allocation6], 0
    %14 = vsyncpa [#allocation4], 0
    %s15 = scalar_lea.sflag [#allocation4], 1
    %16 = vsyncpa %s15, 0
    %17 = vsyncpa [#allocation9], 0
    %s18 = scalar_lea.sflag [#allocation9], 1
    %19 = vsyncpa %s18, 0
    loop: start=0, step=1, limit=5
    $region2: #{tpu_custom_call.1} parent=1 // loop_pre_header
      _
    $region3: #{tpu_custom_call.1} parent=1 // loop_header
      %s21 = sphi 0, %s25
      %p22 = scmp.ge.s32.totalorder %s21, 5
      %s31 = sphi 0, %s33
      %s34 = sphi 0, %s31
      %s35 = sphi 0, %s34
      %s51 = sphi 0, %s35
      %s55 = sphi 0, %s55
      %s57 = sphi 0, %s55
      %s58 = sphi 0, %s57
      %s72 = sphi 0, %s58
      %s76 = sphi 0, %s76
      %s78 = sphi 0, %s76
      %s79 = sphi 0, %s78
      %s93 = sphi 0, %s79
      %s99 = sphi 0, %s101
      %s102 = sphi 0, %s99
      %s103 = sphi 0, %s102
      %s119 = sphi 0, %s103
      %s125 = sphi 0, %s127
      %s128 = sphi 0, %s125
      %s129 = sphi 0, %s128
      %s145 = sphi 0, %s129
    $region4: #{tpu_custom_call.1} parent=1 // loop_header_branch
      %24 = sbr.rel (%p22) target = $region8
    $region5: #{tpu_custom_call.1} parent=1 // loop_body
      %s26 = ssub.s32 %s21, 1
      %s27 = ssub.s32 %s21, 2
      %s28 = sadd.s32 %s21, 1
      %s29 = ssub.s32 %s21, %s28
      %p30 = scmp.eq.s32.totalorder %s29, 0
      %s32 = sadd.s32 %s31, 1
      %s33 = scalar_select %p30, %s31, %s32
      %p36 = pneg %p30
      %p37 = scmp.eq.s32.totalorder %s21, 2
      %p38 = por %p36, %p37
      %p39 = scmp.ne.s32.totalorder %s31, %s34
      %p40 = scmp.eq.s32.totalorder %s21, 0
      %p41 = por %p39, %p40
      %p42 = scmp.ne.s32.totalorder %s31, %s34
      %p43 = scmp.eq.s32.totalorder %s26, 2
      %p44 = por %p42, %p43
      %p45 = scmp.ne.s32.totalorder %s34, %s35
      %p46 = scmp.eq.s32.totalorder %s26, 0
      %p47 = por %p45, %p46
      %p48 = scmp.ne.s32.totalorder %s34, %s35
      %p49 = scmp.eq.s32.totalorder %s27, 2
      %p50 = por %p48, %p49
      %p52 = scmp.ne.s32.totalorder %s35, %s51
      %p53 = scmp.eq.s32.totalorder %s27, 0
      %p54 = por %p52, %p53
      %s56 = sadd.s32 %s55, 1
      %p59 = scmp.eq.s32.totalorder %s21, 2
      %p60 = scmp.ne.s32.totalorder %s55, %s57
      %p61 = scmp.eq.s32.totalorder %s21, 0
      %p62 = por %p60, %p61
      %p63 = scmp.ne.s32.totalorder %s55, %s57
      %p64 = scmp.eq.s32.totalorder %s26, 2
      %p65 = por %p63, %p64
      %p66 = scmp.ne.s32.totalorder %s57, %s58
      %p67 = scmp.eq.s32.totalorder %s26, 0
      %p68 = por %p66, %p67
      %p69 = scmp.ne.s32.totalorder %s57, %s58
      %p70 = scmp.eq.s32.totalorder %s27, 2
      %p71 = por %p69, %p70
      %p73 = scmp.ne.s32.totalorder %s58, %s72
      %p74 = scmp.eq.s32.totalorder %s27, 0
      %p75 = por %p73, %p74
      %s77 = sadd.s32 %s76, 1
      %p80 = scmp.eq.s32.totalorder %s21, 2
      %p81 = scmp.ne.s32.totalorder %s76, %s78
      %p82 = scmp.eq.s32.totalorder %s21, 0
      %p83 = por %p81, %p82
      %p84 = scmp.ne.s32.totalorder %s76, %s78
      %p85 = scmp.eq.s32.totalorder %s26, 2
      %p86 = por %p84, %p85
      %p87 = scmp.ne.s32.totalorder %s78, %s79
      %p88 = scmp.eq.s32.totalorder %s26, 0
      %p89 = por %p87, %p88
      %p90 = scmp.ne.s32.totalorder %s78, %s79
      %p91 = scmp.eq.s32.totalorder %s27, 2
      %p92 = por %p90, %p91
      %p94 = scmp.ne.s32.totalorder %s79, %s93
      %p95 = scmp.eq.s32.totalorder %s27, 0
      %p96 = por %p94, %p95
      %s97 = ssub.s32 %s21, %s28
      %p98 = scmp.eq.s32.totalorder %s97, 0
      %s100 = sadd.s32 %s99, 1
      %s101 = scalar_select %p98, %s99, %s100
      %p104 = pneg %p98
      %p105 = scmp.eq.s32.totalorder %s21, 2
      %p106 = por %p104, %p105
      %p107 = scmp.ne.s32.totalorder %s99, %s102
      %p108 = scmp.eq.s32.totalorder %s21, 0
      %p109 = por %p107, %p108
      %p110 = scmp.ne.s32.totalorder %s99, %s102
      %p111 = scmp.eq.s32.totalorder %s26, 2
      %p112 = por %p110, %p111
      %p113 = scmp.ne.s32.totalorder %s102, %s103
      %p114 = scmp.eq.s32.totalorder %s26, 0
      %p115 = por %p113, %p114
      %p116 = scmp.ne.s32.totalorder %s102, %s103
      %p117 = scmp.eq.s32.totalorder %s27, 2
      %p118 = por %p116, %p117
      %p120 = scmp.ne.s32.totalorder %s103, %s119
      %p121 = scmp.eq.s32.totalorder %s27, 0
      %p122 = por %p120, %p121
      %s123 = ssub.s32 %s21, %s28
      %p124 = scmp.eq.s32.totalorder %s123, 0
      %s126 = sadd.s32 %s125, 1
      %s127 = scalar_select %p124, %s125, %s126
      %p130 = pneg %p124
      %p131 = scmp.eq.s32.totalorder %s21, 2
      %p132 = por %p130, %p131
      %p133 = scmp.ne.s32.totalorder %s125, %s128
      %p134 = scmp.eq.s32.totalorder %s21, 0
      %p135 = por %p133, %p134
      %p136 = scmp.ne.s32.totalorder %s125, %s128
      %p137 = scmp.eq.s32.totalorder %s26, 2
      %p138 = por %p136, %p137
      %p139 = scmp.ne.s32.totalorder %s128, %s129
      %p140 = scmp.eq.s32.totalorder %s26, 0
      %p141 = por %p139, %p140
      %p142 = scmp.ne.s32.totalorder %s128, %s129
      %p143 = scmp.eq.s32.totalorder %s27, 2
      %p144 = por %p142, %p143
      %p146 = scmp.ne.s32.totalorder %s129, %s145
      %p147 = scmp.eq.s32.totalorder %s27, 0
      %p148 = por %p146, %p147
      %p149 = scmp.le.s32.totalorder 1, %s21
      %p150 = scmp.lt.s32.totalorder %s21, 4
      %p151 = pnand %p149, %p150
      %p152 = pneg %p151
      // Predicated region
      $region9: #{tpu_custom_call.1} parent=5 // pred_check
        _
      $region10: #{tpu_custom_call.1} parent=5 // pred_check_branch
        %154 = sbr.rel (%p151) target = $region12
      $region11: #{tpu_custom_call.1} parent=5 // pred_region
        %s155 = ssub.s32 %s21, 1
        // Predicated region
        $region13: #{tpu_custom_call.1} parent=11 // pred_check
          %p156 = pneg %p68
        $region14: #{tpu_custom_call.1} parent=11 // pred_check_branch
          %158 = sbr.rel (%p156) target = $region16
        $region15: #{tpu_custom_call.1} parent=11 // pred_region
          %160 = vsyncadd [#allocation6], 0
          %s161 = sshll.u32 %s1, 4
          %s162 = int_to_ptr.hbm [resolvable:$true] %s161
          %s163 = sshll.u32 [#allocation5], 4
          %s164 = int_to_ptr.vmem [resolvable:$true] %s163
          %169 = dma.hbm_to_vmem [thread:$0]  %s162, 8192, %s164, [#allocation6], 256, 256, 16
        $region16: #{tpu_custom_call.1} parent=11 // pred_fallthru
          _
        // Predicated region
        $region17: #{tpu_custom_call.1} parent=11 // pred_check
          %p170 = pneg %p89
        $region18: #{tpu_custom_call.1} parent=11 // pred_check_branch
          %172 = sbr.rel (%p170) target = $region20
        $region19: #{tpu_custom_call.1} parent=11 // pred_region
          _
        $region20: #{tpu_custom_call.1} parent=11 // pred_fallthru
          _
      $region12: #{tpu_custom_call.1} parent=5 // pred_fallthru
        _
      %p173 = scmp.lt.s32.totalorder %s21, 3
      // Predicated region
      $region21: #{tpu_custom_call.1} parent=5 // pred_check
        %p174 = pneg %p173
      $region22: #{tpu_custom_call.1} parent=5 // pred_check_branch
        %176 = sbr.rel (%p174) target = $region24
      $region23: #{tpu_custom_call.1} parent=5 // pred_region
        // Predicated region
        $region25: #{tpu_custom_call.1} parent=23 // pred_check
          %p177 = pneg %p41
        $region26: #{tpu_custom_call.1} parent=23 // pred_check_branch
          %179 = sbr.rel (%p177) target = $region28
        $region27: #{tpu_custom_call.1} parent=23 // pred_region
          %s180 = sand.u32 %s31, 1
          %s181 = scalar_lea.sflag [#allocation3], %s180
          %s182 = sand.u32 %s31, 1
          %s183 = smul.addr %s182, 256
          %s184 = scalar_lea.vmem [#allocation2], %s183
          %s185 = smul.u32 16, %s21
          %187 = vsyncadd %s181, 0
          %s188 = smul.addr %s185, 2
          %s189 = smul.addr %s188, 8
          %s190 = scalar_lea.hbm %s0, %s189
          %s191 = sshll.u32 %s190, 4
          %s192 = int_to_ptr.hbm [resolvable:$true] %s191
          %s193 = sshll.u32 %s184, 4
          %s194 = int_to_ptr.vmem [resolvable:$true] %s193
          %199 = dma.hbm_to_vmem [thread:$0]  %s192, 4096, %s194, %s181, 256, 256, 16
        $region28: #{tpu_custom_call.1} parent=23 // pred_fallthru
          _
      $region24: #{tpu_custom_call.1} parent=5 // pred_fallthru
        _
      %p200 = scmp.le.s32.totalorder 1, %s21
      %p201 = scmp.lt.s32.totalorder %s21, 4
      %p202 = pnand %p200, %p201
      %p203 = pneg %p202
      // Predicated region
      $region29: #{tpu_custom_call.1} parent=5 // pred_check
        _
      $region30: #{tpu_custom_call.1} parent=5 // pred_check_branch
        %205 = sbr.rel (%p202) target = $region32
      $region31: #{tpu_custom_call.1} parent=5 // pred_region
        %s206 = ssub.s32 %s21, 1
        %s207 = sand.u32 %s34, 1
        %s208 = scalar_lea.sflag [#allocation3], %s207
        %s209 = sand.u32 %s34, 1
        %s210 = smul.addr %s209, 256
        %s211 = scalar_lea.vmem [#allocation2], %s210
        // Predicated region
        $region33: #{tpu_custom_call.1} parent=31 // pred_check
          %p212 = pneg %p47
        $region34: #{tpu_custom_call.1} parent=31 // pred_check_branch
          %214 = sbr.rel (%p212) target = $region36
        $region35: #{tpu_custom_call.1} parent=31 // pred_region
          %216 = dma.done %s208, 4096
        $region36: #{tpu_custom_call.1} parent=31 // pred_fallthru
          _
        // Predicated region
        $region37: #{tpu_custom_call.1} parent=31 // pred_check
          %p217 = pneg %p68
        $region38: #{tpu_custom_call.1} parent=31 // pred_check_branch
          %219 = sbr.rel (%p217) target = $region40
        $region39: #{tpu_custom_call.1} parent=31 // pred_region
          %221 = dma.done [#allocation6], 8192
        $region40: #{tpu_custom_call.1} parent=31 // pred_fallthru
          _
        %s222 = sand.u32 %s34, 1
        %s223 = scalar_lea.sflag [#allocation3], %s222
        %s224 = sand.u32 %s34, 1
        %s225 = smul.addr %s224, 256
        %s226 = scalar_lea.vmem [#allocation2], %s225
        %p227 = pneg %p47
        %p228 = pneg %p44
        %p229 = pneg %p68
        %p230 = pneg %p65
        %p231 = pneg %p89
        %p232 = pneg %p86
        %p233 = pneg %p115
        %p234 = pneg %p112
        %s235 = sand.u32 %s102, 1
        %s236 = scalar_lea.sflag [#allocation4], %s235
        %s237 = sand.u32 %s102, 1
        %s238 = smul.addr %s237, 64
        %s239 = scalar_lea.vmem [#allocation7], %s238
        %p240 = pneg %p141
        %p241 = pneg %p138
        %s242 = sand.u32 %s128, 1
        %s243 = scalar_lea.sflag [#allocation9], %s242
        %s244 = sand.u32 %s128, 1
        %s245 = smul.addr %s244, 128
        %s246 = scalar_lea.vmem [#allocation8], %s245
        %s247 = smul.u32 16, %s26
        %s248 = smul.u32 16, %s26
        %s249 = smul.u32 16, %s26
        %v250 = vld [vmem:[%s211] sm:$0xff]
        %v251 = vld [vmem:[%s211 + $0x8] sm:$0xff]
        %v252 = vld [vmem:[%s211 + $0x10] sm:$0xff]
        %v253 = vld [vmem:[%s211 + $0x18] sm:$0xff]
        %v254 = vld [vmem:[%s211 + $0x20] sm:$0xff]
        %v255 = vld [vmem:[%s211 + $0x28] sm:$0xff]
        %v256 = vld [vmem:[%s211 + $0x30] sm:$0xff]
        %v257 = vld [vmem:[%s211 + $0x38] sm:$0xff]
        %v258 = vld [vmem:[%s211 + $0x40] sm:$0xff]
        %v259 = vld [vmem:[%s211 + $0x48] sm:$0xff]
        %v260 = vld [vmem:[%s211 + $0x50] sm:$0xff]
        %v261 = vld [vmem:[%s211 + $0x58] sm:$0xff]
        %v262 = vld [vmem:[%s211 + $0x60] sm:$0xff]
        %v263 = vld [vmem:[%s211 + $0x68] sm:$0xff]
        %v264 = vld [vmem:[%s211 + $0x70] sm:$0xff]
        %v265 = vld [vmem:[%s211 + $0x78] sm:$0xff]
        %v266 = vld [vmem:[%s211 + $0x80] sm:$0xff]
        %v267 = vld [vmem:[%s211 + $0x88] sm:$0xff]
        %v268 = vld [vmem:[%s211 + $0x90] sm:$0xff]
        %v269 = vld [vmem:[%s211 + $0x98] sm:$0xff]
        %v270 = vld [vmem:[%s211 + $0xa0] sm:$0xff]
        %v271 = vld [vmem:[%s211 + $0xa8] sm:$0xff]
        %v272 = vld [vmem:[%s211 + $0xb0] sm:$0xff]
        %v273 = vld [vmem:[%s211 + $0xb8] sm:$0xff]
        %v274 = vld [vmem:[%s211 + $0xc0] sm:$0xff]
        %v275 = vld [vmem:[%s211 + $0xc8] sm:$0xff]
        %v276 = vld [vmem:[%s211 + $0xd0] sm:$0xff]
        %v277 = vld [vmem:[%s211 + $0xd8] sm:$0xff]
        %v278 = vld [vmem:[%s211 + $0xe0] sm:$0xff]
        %v279 = vld [vmem:[%s211 + $0xe8] sm:$0xff]
        %v280 = vld [vmem:[%s211 + $0xf0] sm:$0xff]
        %v281 = vld [vmem:[%s211 + $0xf8] sm:$0xff]
        %v282 = vld [vmem:[#allocation5] sm:$0xff]
        %v283 = vld [vmem:[#allocation5 + $0x8] sm:$0xff]
        %v284 = vld [vmem:[#allocation5 + $0x10] sm:$0xff]
        %v285 = vld [vmem:[#allocation5 + $0x18] sm:$0xff]
        %v286 = vld [vmem:[#allocation5 + $0x20] sm:$0xff]
        %v287 = vld [vmem:[#allocation5 + $0x28] sm:$0xff]
        %v288 = vld [vmem:[#allocation5 + $0x30] sm:$0xff]
        %v289 = vld [vmem:[#allocation5 + $0x38] sm:$0xff]
        %v290 = vld [vmem:[#allocation5 + $0x40] sm:$0xff]
        %v291 = vld [vmem:[#allocation5 + $0x48] sm:$0xff]
        %v292 = vld [vmem:[#allocation5 + $0x50] sm:$0xff]
        %v293 = vld [vmem:[#allocation5 + $0x58] sm:$0xff]
        %v294 = vld [vmem:[#allocation5 + $0x60] sm:$0xff]
        %v295 = vld [vmem:[#allocation5 + $0x68] sm:$0xff]
        %v296 = vld [vmem:[#allocation5 + $0x70] sm:$0xff]
        %v297 = vld [vmem:[#allocation5 + $0x78] sm:$0xff]
        %v298 = vld [vmem:[#allocation5 + $0x80] sm:$0xff]
        %v299 = vld [vmem:[#allocation5 + $0x88] sm:$0xff]
        %v300 = vld [vmem:[#allocation5 + $0x90] sm:$0xff]
        %v301 = vld [vmem:[#allocation5 + $0x98] sm:$0xff]
        %v302 = vld [vmem:[#allocation5 + $0xa0] sm:$0xff]
        %v303 = vld [vmem:[#allocation5 + $0xa8] sm:$0xff]
        %v304 = vld [vmem:[#allocation5 + $0xb0] sm:$0xff]
        %v305 = vld [vmem:[#allocation5 + $0xb8] sm:$0xff]
        %v306 = vld [vmem:[#allocation5 + $0xc0] sm:$0xff]
        %v307 = vld [vmem:[#allocation5 + $0xc8] sm:$0xff]
        %v308 = vld [vmem:[#allocation5 + $0xd0] sm:$0xff]
        %v309 = vld [vmem:[#allocation5 + $0xd8] sm:$0xff]
        %v310 = vld [vmem:[#allocation5 + $0xe0] sm:$0xff]
        %v311 = vld [vmem:[#allocation5 + $0xe8] sm:$0xff]
        %v312 = vld [vmem:[#allocation5 + $0xf0] sm:$0xff]
        %v313 = vld [vmem:[#allocation5 + $0xf8] sm:$0xff]
        %v314 = vld [vmem:[#allocation5 + $0x100] sm:$0xff]
        %v315 = vld [vmem:[#allocation5 + $0x108] sm:$0xff]
        %v316 = vld [vmem:[#allocation5 + $0x110] sm:$0xff]
        %v317 = vld [vmem:[#allocation5 + $0x118] sm:$0xff]
        %v318 = vld [vmem:[#allocation5 + $0x120] sm:$0xff]
        %v319 = vld [vmem:[#allocation5 + $0x128] sm:$0xff]
        %v320 = vld [vmem:[#allocation5 + $0x130] sm:$0xff]
        %v321 = vld [vmem:[#allocation5 + $0x138] sm:$0xff]
        %v322 = vld [vmem:[#allocation5 + $0x140] sm:$0xff]
        %v323 = vld [vmem:[#allocation5 + $0x148] sm:$0xff]
        %v324 = vld [vmem:[#allocation5 + $0x150] sm:$0xff]
        %v325 = vld [vmem:[#allocation5 + $0x158] sm:$0xff]
        %v326 = vld [vmem:[#allocation5 + $0x160] sm:$0xff]
        %v327 = vld [vmem:[#allocation5 + $0x168] sm:$0xff]
        %v328 = vld [vmem:[#allocation5 + $0x170] sm:$0xff]
        %v329 = vld [vmem:[#allocation5 + $0x178] sm:$0xff]
        %v330 = vld [vmem:[#allocation5 + $0x180] sm:$0xff]
        %v331 = vld [vmem:[#allocation5 + $0x188] sm:$0xff]
        %v332 = vld [vmem:[#allocation5 + $0x190] sm:$0xff]
        %v333 = vld [vmem:[#allocation5 + $0x198] sm:$0xff]
        %v334 = vld [vmem:[#allocation5 + $0x1a0] sm:$0xff]
        %v335 = vld [vmem:[#allocation5 + $0x1a8] sm:$0xff]
        %v336 = vld [vmem:[#allocation5 + $0x1b0] sm:$0xff]
        %v337 = vld [vmem:[#allocation5 + $0x1b8] sm:$0xff]
        %v338 = vld [vmem:[#allocation5 + $0x1c0] sm:$0xff]
        %v339 = vld [vmem:[#allocation5 + $0x1c8] sm:$0xff]
        %v340 = vld [vmem:[#allocation5 + $0x1d0] sm:$0xff]
        %v341 = vld [vmem:[#allocation5 + $0x1d8] sm:$0xff]
        %v342 = vld [vmem:[#allocation5 + $0x1e0] sm:$0xff]
        %v343 = vld [vmem:[#allocation5 + $0x1e8] sm:$0xff]
        %v344 = vld [vmem:[#allocation5 + $0x1f0] sm:$0xff]
        %v345 = vld [vmem:[#allocation5 + $0x1f8] sm:$0xff]
        %346 = vmatpush.msra.mxu0 %v312
        %347 = vmatpush.msra.mxu0 %v310
        %348 = vmatpush.msra.mxu0 %v308
        %349 = vmatpush.msra.mxu0 %v306
        %350 = vmatpush.msra.mxu0 %v304
        %351 = vmatpush.msra.mxu0 %v302
        %352 = vmatpush.msra.mxu0 %v300
        %353 = vmatpush.msra.mxu0 %v298
        %354 = vmatpush.msra.mxu0 %v296
        %355 = vmatpush.msra.mxu0 %v294
        %356 = vmatpush.msra.mxu0 %v292
        %357 = vmatpush.msra.mxu0 %v290
        %358 = vmatpush.msra.mxu0 %v288
        %359 = vmatpush.msra.mxu0 %v286
        %360 = vmatpush.msra.mxu0 %v284
        %361 = vmatpush.msra.mxu0 %v282
        %362 = vmatmul.f32.gmra.mxu0 %v250
        %v363 = vpop.f32.mrf.mxu0
        %v364 = vadd.f32 0.0, %v363
        %365 = vmatmul.f32.gmra.mxu0 %v252
        %v366 = vpop.f32.mrf.mxu0
        %v367 = vadd.f32 0.0, %v366
        %368 = vmatmul.f32.gmra.mxu0 %v254
        %v369 = vpop.f32.mrf.mxu0
        %v370 = vadd.f32 0.0, %v369
        %371 = vmatmul.f32.gmra.mxu0 %v256
        %v372 = vpop.f32.mrf.mxu0
        %v373 = vadd.f32 0.0, %v372
        %374 = vmatmul.f32.gmra.mxu0 %v258
        %v375 = vpop.f32.mrf.mxu0
        %v376 = vadd.f32 0.0, %v375
        %377 = vmatmul.f32.gmra.mxu0 %v260
        %v378 = vpop.f32.mrf.mxu0
        %v379 = vadd.f32 0.0, %v378
        %380 = vmatmul.f32.gmra.mxu0 %v262
        %v381 = vpop.f32.mrf.mxu0
        %v382 = vadd.f32 0.0, %v381
        %383 = vmatmul.f32.gmra.mxu0 %v264
        %v384 = vpop.f32.mrf.mxu0
        %v385 = vadd.f32 0.0, %v384
        %386 = vmatmul.f32.gmra.mxu0 %v266
        %v387 = vpop.f32.mrf.mxu0
        %v388 = vadd.f32 0.0, %v387
        %389 = vmatmul.f32.gmra.mxu0 %v268
        %v390 = vpop.f32.mrf.mxu0
        %v391 = vadd.f32 0.0, %v390
        %392 = vmatmul.f32.gmra.mxu0 %v270
        %v393 = vpop.f32.mrf.mxu0
        %v394 = vadd.f32 0.0, %v393
        %395 = vmatmul.f32.gmra.mxu0 %v272
        %v396 = vpop.f32.mrf.mxu0
        %v397 = vadd.f32 0.0, %v396
        %398 = vmatmul.f32.gmra.mxu0 %v274
        %v399 = vpop.f32.mrf.mxu0
        %v400 = vadd.f32 0.0, %v399
        %401 = vmatmul.f32.gmra.mxu0 %v276
        %v402 = vpop.f32.mrf.mxu0
        %v403 = vadd.f32 0.0, %v402
        %404 = vmatmul.f32.gmra.mxu0 %v278
        %v405 = vpop.f32.mrf.mxu0
        %v406 = vadd.f32 0.0, %v405
        %407 = vmatmul.f32.gmra.mxu0 %v280
        %v408 = vpop.f32.mrf.mxu0
        %v409 = vadd.f32 0.0, %v408
        %410 = vdwg.mxu0
        %411 = vmatpush.msra.mxu0 %v344
        %412 = vmatpush.msra.mxu0 %v342
        %413 = vmatpush.msra.mxu0 %v340
        %414 = vmatpush.msra.mxu0 %v338
        %415 = vmatpush.msra.mxu0 %v336
        %416 = vmatpush.msra.mxu0 %v334
        %417 = vmatpush.msra.mxu0 %v332
        %418 = vmatpush.msra.mxu0 %v330
        %419 = vmatpush.msra.mxu0 %v328
        %420 = vmatpush.msra.mxu0 %v326
        %421 = vmatpush.msra.mxu0 %v324
        %422 = vmatpush.msra.mxu0 %v322
        %423 = vmatpush.msra.mxu0 %v320
        %424 = vmatpush.msra.mxu0 %v318
        %425 = vmatpush.msra.mxu0 %v316
        %426 = vmatpush.msra.mxu0 %v314
        %427 = vmatmul.f32.gmra.mxu0 %v251
        %v428 = vpop.f32.mrf.mxu0
        %v429 = vadd.f32 %v364, %v428
        %430 = vmatmul.f32.gmra.mxu0 %v253
        %v431 = vpop.f32.mrf.mxu0
        %v432 = vadd.f32 %v367, %v431
        %433 = vmatmul.f32.gmra.mxu0 %v255
        %v434 = vpop.f32.mrf.mxu0
        %v435 = vadd.f32 %v370, %v434
        %436 = vmatmul.f32.gmra.mxu0 %v257
        %v437 = vpop.f32.mrf.mxu0
        %v438 = vadd.f32 %v373, %v437
        %439 = vmatmul.f32.gmra.mxu0 %v259
        %v440 = vpop.f32.mrf.mxu0
        %v441 = vadd.f32 %v376, %v440
        %442 = vmatmul.f32.gmra.mxu0 %v261
        %v443 = vpop.f32.mrf.mxu0
        %v444 = vadd.f32 %v379, %v443
        %445 = vmatmul.f32.gmra.mxu0 %v263
        %v446 = vpop.f32.mrf.mxu0
        %v447 = vadd.f32 %v382, %v446
        %448 = vmatmul.f32.gmra.mxu0 %v265
        %v449 = vpop.f32.mrf.mxu0
        %v450 = vadd.f32 %v385, %v449
        %451 = vmatmul.f32.gmra.mxu0 %v267
        %v452 = vpop.f32.mrf.mxu0
        %v453 = vadd.f32 %v388, %v452
        %454 = vmatmul.f32.gmra.mxu0 %v269
        %v455 = vpop.f32.mrf.mxu0
        %v456 = vadd.f32 %v391, %v455
        %457 = vmatmul.f32.gmra.mxu0 %v271
        %v458 = vpop.f32.mrf.mxu0
        %v459 = vadd.f32 %v394, %v458
        %460 = vmatmul.f32.gmra.mxu0 %v273
        %v461 = vpop.f32.mrf.mxu0
        %v462 = vadd.f32 %v397, %v461
        %463 = vmatmul.f32.gmra.mxu0 %v275
        %v464 = vpop.f32.mrf.mxu0
        %v465 = vadd.f32 %v400, %v464
        %466 = vmatmul.f32.gmra.mxu0 %v277
        %v467 = vpop.f32.mrf.mxu0
        %v468 = vadd.f32 %v403, %v467
        %469 = vmatmul.f32.gmra.mxu0 %v279
        %v470 = vpop.f32.mrf.mxu0
        %v471 = vadd.f32 %v406, %v470
        %472 = vmatmul.f32.gmra.mxu0 %v281
        %v473 = vpop.f32.mrf.mxu0
        %v474 = vadd.f32 %v409, %v473
        %475 = vdwg.mxu0
        %476 = vmatpush.msra.mxu0 %v313
        %477 = vmatpush.msra.mxu0 %v311
        %478 = vmatpush.msra.mxu0 %v309
        %479 = vmatpush.msra.mxu0 %v307
        %480 = vmatpush.msra.mxu0 %v305
        %481 = vmatpush.msra.mxu0 %v303
        %482 = vmatpush.msra.mxu0 %v301
        %483 = vmatpush.msra.mxu0 %v299
        %484 = vmatpush.msra.mxu0 %v297
        %485 = vmatpush.msra.mxu0 %v295
        %486 = vmatpush.msra.mxu0 %v293
        %487 = vmatpush.msra.mxu0 %v291
        %488 = vmatpush.msra.mxu0 %v289
        %489 = vmatpush.msra.mxu0 %v287
        %490 = vmatpush.msra.mxu0 %v285
        %491 = vmatpush.msra.mxu0 %v283
        %492 = vmatmul.f32.gmra.mxu0 %v250
        %v493 = vpop.f32.mrf.mxu0
        %v494 = vadd.f32 0.0, %v493
        %495 = vmatmul.f32.gmra.mxu0 %v252
        %v496 = vpop.f32.mrf.mxu0
        %v497 = vadd.f32 0.0, %v496
        %498 = vmatmul.f32.gmra.mxu0 %v254
        %v499 = vpop.f32.mrf.mxu0
        %v500 = vadd.f32 0.0, %v499
        %501 = vmatmul.f32.gmra.mxu0 %v256
        %v502 = vpop.f32.mrf.mxu0
        %v503 = vadd.f32 0.0, %v502
        %504 = vmatmul.f32.gmra.mxu0 %v258
        %v505 = vpop.f32.mrf.mxu0
        %v506 = vadd.f32 0.0, %v505
        %507 = vmatmul.f32.gmra.mxu0 %v260
        %v508 = vpop.f32.mrf.mxu0
        %v509 = vadd.f32 0.0, %v508
        %510 = vmatmul.f32.gmra.mxu0 %v262
        %v511 = vpop.f32.mrf.mxu0
        %v512 = vadd.f32 0.0, %v511
        %513 = vmatmul.f32.gmra.mxu0 %v264
        %v514 = vpop.f32.mrf.mxu0
        %v515 = vadd.f32 0.0, %v514
        %516 = vmatmul.f32.gmra.mxu0 %v266
        %v517 = vpop.f32.mrf.mxu0
        %v518 = vadd.f32 0.0, %v517
        %519 = vmatmul.f32.gmra.mxu0 %v268
        %v520 = vpop.f32.mrf.mxu0
        %v521 = vadd.f32 0.0, %v520
        %522 = vmatmul.f32.gmra.mxu0 %v270
        %v523 = vpop.f32.mrf.mxu0
        %v524 = vadd.f32 0.0, %v523
        %525 = vmatmul.f32.gmra.mxu0 %v272
        %v526 = vpop.f32.mrf.mxu0
        %v527 = vadd.f32 0.0, %v526
        %528 = vmatmul.f32.gmra.mxu0 %v274
        %v529 = vpop.f32.mrf.mxu0
        %v530 = vadd.f32 0.0, %v529
        %531 = vmatmul.f32.gmra.mxu0 %v276
        %v532 = vpop.f32.mrf.mxu0
        %v533 = vadd.f32 0.0, %v532
        %534 = vmatmul.f32.gmra.mxu0 %v278
        %v535 = vpop.f32.mrf.mxu0
        %v536 = vadd.f32 0.0, %v535
        %537 = vmatmul.f32.gmra.mxu0 %v280
        %v538 = vpop.f32.mrf.mxu0
        %v539 = vadd.f32 0.0, %v538
        %540 = vdwg.mxu0
        %541 = vmatpush.msra.mxu0 %v345
        %542 = vmatpush.msra.mxu0 %v343
        %543 = vmatpush.msra.mxu0 %v341
        %544 = vmatpush.msra.mxu0 %v339
        %545 = vmatpush.msra.mxu0 %v337
        %546 = vmatpush.msra.mxu0 %v335
        %547 = vmatpush.msra.mxu0 %v333
        %548 = vmatpush.msra.mxu0 %v331
        %549 = vmatpush.msra.mxu0 %v329
        %550 = vmatpush.msra.mxu0 %v327
        %551 = vmatpush.msra.mxu0 %v325
        %552 = vmatpush.msra.mxu0 %v323
        %553 = vmatpush.msra.mxu0 %v321
        %554 = vmatpush.msra.mxu0 %v319
        %555 = vmatpush.msra.mxu0 %v317
        %556 = vmatpush.msra.mxu0 %v315
        %557 = vmatmul.f32.gmra.mxu0 %v251
        %v558 = vpop.f32.mrf.mxu0
        %v559 = vadd.f32 %v494, %v558
        %560 = vmatmul.f32.gmra.mxu0 %v253
        %v561 = vpop.f32.mrf.mxu0
        %v562 = vadd.f32 %v497, %v561
        %563 = vmatmul.f32.gmra.mxu0 %v255
        %v564 = vpop.f32.mrf.mxu0
        %v565 = vadd.f32 %v500, %v564
        %566 = vmatmul.f32.gmra.mxu0 %v257
        %v567 = vpop.f32.mrf.mxu0
        %v568 = vadd.f32 %v503, %v567
        %569 = vmatmul.f32.gmra.mxu0 %v259
        %v570 = vpop.f32.mrf.mxu0
        %v571 = vadd.f32 %v506, %v570
        %572 = vmatmul.f32.gmra.mxu0 %v261
        %v573 = vpop.f32.mrf.mxu0
        %v574 = vadd.f32 %v509, %v573
        %575 = vmatmul.f32.gmra.mxu0 %v263
        %v576 = vpop.f32.mrf.mxu0
        %v577 = vadd.f32 %v512, %v576
        %578 = vmatmul.f32.gmra.mxu0 %v265
        %v579 = vpop.f32.mrf.mxu0
        %v580 = vadd.f32 %v515, %v579
        %581 = vmatmul.f32.gmra.mxu0 %v267
        %v582 = vpop.f32.mrf.mxu0
        %v583 = vadd.f32 %v518, %v582
        %584 = vmatmul.f32.gmra.mxu0 %v269
        %v585 = vpop.f32.mrf.mxu0
        %v586 = vadd.f32 %v521, %v585
        %587 = vmatmul.f32.gmra.mxu0 %v271
        %v588 = vpop.f32.mrf.mxu0
        %v589 = vadd.f32 %v524, %v588
        %590 = vmatmul.f32.gmra.mxu0 %v273
        %v591 = vpop.f32.mrf.mxu0
        %v592 = vadd.f32 %v527, %v591
        %593 = vmatmul.f32.gmra.mxu0 %v275
        %v594 = vpop.f32.mrf.mxu0
        %v595 = vadd.f32 %v530, %v594
        %596 = vmatmul.f32.gmra.mxu0 %v277
        %v597 = vpop.f32.mrf.mxu0
        %v598 = vadd.f32 %v533, %v597
        %599 = vmatmul.f32.gmra.mxu0 %v279
        %v600 = vpop.f32.mrf.mxu0
        %v601 = vadd.f32 %v536, %v600
        %602 = vmatmul.f32.gmra.mxu0 %v281
        %v603 = vpop.f32.mrf.mxu0
        %v604 = vadd.f32 %v539, %v603
        %605 = vdwg.mxu0
        %v606 = vpack.c.bf16 %v429, %v429
        %v607 = vpack.c.bf16 %v432, %v432
        %v608 = vpack.c.bf16 %v435, %v435
        %v609 = vpack.c.bf16 %v438, %v438
        %v610 = vpack.c.bf16 %v441, %v441
        %v611 = vpack.c.bf16 %v444, %v444
        %v612 = vpack.c.bf16 %v447, %v447
        %v613 = vpack.c.bf16 %v450, %v450
        %v614 = vpack.c.bf16 %v453, %v453
        %v615 = vpack.c.bf16 %v456, %v456
        %v616 = vpack.c.bf16 %v459, %v459
        %v617 = vpack.c.bf16 %v462, %v462
        %v618 = vpack.c.bf16 %v465, %v465
        %v619 = vpack.c.bf16 %v468, %v468
        %v620 = vpack.c.bf16 %v471, %v471
        %v621 = vpack.c.bf16 %v474, %v474
        %622 = vst [vmem:[%s239] sm:$0xf] %v606
        %623 = vst [vmem:[%s239 + $0x4] sm:$0xf] %v607
        %624 = vst [vmem:[%s239 + $0x8] sm:$0xf] %v608
        %625 = vst [vmem:[%s239 + $0xc] sm:$0xf] %v609
        %626 = vst [vmem:[%s239 + $0x10] sm:$0xf] %v610
        %627 = vst [vmem:[%s239 + $0x14] sm:$0xf] %v611
        %628 = vst [vmem:[%s239 + $0x18] sm:$0xf] %v612
        %629 = vst [vmem:[%s239 + $0x1c] sm:$0xf] %v613
        %630 = vst [vmem:[%s239 + $0x20] sm:$0xf] %v614
        %631 = vst [vmem:[%s239 + $0x24] sm:$0xf] %v615
        %632 = vst [vmem:[%s239 + $0x28] sm:$0xf] %v616
        %633 = vst [vmem:[%s239 + $0x2c] sm:$0xf] %v617
        %634 = vst [vmem:[%s239 + $0x30] sm:$0xf] %v618
        %635 = vst [vmem:[%s239 + $0x34] sm:$0xf] %v619
        %636 = vst [vmem:[%s239 + $0x38] sm:$0xf] %v620
        %637 = vst [vmem:[%s239 + $0x3c] sm:$0xf] %v621
        %v638 = vld [vmem:[%s2] sm:$0x1]
        %v640 = vperm.slane %v638, 0
        %v642 = vadd.f32 %v559, %v640
        %v643 = vadd.f32 %v562, %v640
        %v644 = vadd.f32 %v565, %v640
        %v645 = vadd.f32 %v568, %v640
        %v646 = vadd.f32 %v571, %v640
        %v647 = vadd.f32 %v574, %v640
        %v648 = vadd.f32 %v577, %v640
        %v649 = vadd.f32 %v580, %v640
        %v650 = vadd.f32 %v583, %v640
        %v651 = vadd.f32 %v586, %v640
        %v652 = vadd.f32 %v589, %v640
        %v653 = vadd.f32 %v592, %v640
        %v654 = vadd.f32 %v595, %v640
        %v655 = vadd.f32 %v598, %v640
        %v656 = vadd.f32 %v601, %v640
        %v657 = vadd.f32 %v604, %v640
        %658 = vst [vmem:[%s246] sm:$0xff] %v642
        %659 = vst [vmem:[%s246 + $0x8] sm:$0xff] %v643
        %660 = vst [vmem:[%s246 + $0x10] sm:$0xff] %v644
        %661 = vst [vmem:[%s246 + $0x18] sm:$0xff] %v645
        %662 = vst [vmem:[%s246 + $0x20] sm:$0xff] %v646
        %663 = vst [vmem:[%s246 + $0x28] sm:$0xff] %v647
        %664 = vst [vmem:[%s246 + $0x30] sm:$0xff] %v648
        %665 = vst [vmem:[%s246 + $0x38] sm:$0xff] %v649
        %666 = vst [vmem:[%s246 + $0x40] sm:$0xff] %v650
        %667 = vst [vmem:[%s246 + $0x48] sm:$0xff] %v651
        %668 = vst [vmem:[%s246 + $0x50] sm:$0xff] %v652
        %669 = vst [vmem:[%s246 + $0x58] sm:$0xff] %v653
        %670 = vst [vmem:[%s246 + $0x60] sm:$0xff] %v654
        %671 = vst [vmem:[%s246 + $0x68] sm:$0xff] %v655
        %672 = vst [vmem:[%s246 + $0x70] sm:$0xff] %v656
        %673 = vst [vmem:[%s246 + $0x78] sm:$0xff] %v657
        %s674 = sand.u32 %s102, 1
        %s675 = scalar_lea.sflag [#allocation4], %s674
        %s676 = sand.u32 %s102, 1
        %s677 = smul.addr %s676, 64
        %s678 = scalar_lea.vmem [#allocation7], %s677
        %s679 = sand.u32 %s128, 1
        %s680 = scalar_lea.sflag [#allocation9], %s679
        %s681 = sand.u32 %s128, 1
        %s682 = smul.addr %s681, 128
        %s683 = scalar_lea.vmem [#allocation8], %s682
        // Predicated region
        $region41: #{tpu_custom_call.1} parent=31 // pred_check
          %p684 = pneg %p112
        $region42: #{tpu_custom_call.1} parent=31 // pred_check_branch
          %686 = sbr.rel (%p684) target = $region44
        $region43: #{tpu_custom_call.1} parent=31 // pred_region
          %s687 = smul.u32 16, %s26
          %689 = vsyncadd %s675, 0
          %s690 = smul.addr %s687, 4
          %s691 = scalar_lea.hbm %s3, %s690
          %s692 = sshll.u32 %s678, 4
          %s693 = int_to_ptr.vmem [resolvable:$true] %s692
          %s694 = sshll.u32 %s691, 4
          %s695 = int_to_ptr.hbm [resolvable:$true] %s694
          %700 = dma.vmem_to_hbm [thread:$0]  %s693, 1024, %s695, %s675, 64, 64, 4
        $region44: #{tpu_custom_call.1} parent=31 // pred_fallthru
          _
        // Predicated region
        $region45: #{tpu_custom_call.1} parent=31 // pred_check
          %p701 = pneg %p138
        $region46: #{tpu_custom_call.1} parent=31 // pred_check_branch
          %703 = sbr.rel (%p701) target = $region48
        $region47: #{tpu_custom_call.1} parent=31 // pred_region
          %s704 = smul.u32 16, %s26
          %706 = vsyncadd %s680, 0
          %s707 = smul.addr %s704, 8
          %s708 = scalar_lea.hbm %s4, %s707
          %s709 = sshll.u32 %s683, 4
          %s710 = int_to_ptr.vmem [resolvable:$true] %s709
          %s711 = sshll.u32 %s708, 4
          %s712 = int_to_ptr.hbm [resolvable:$true] %s711
          %717 = dma.vmem_to_hbm [thread:$0]  %s710, 2048, %s712, %s680, 128, 128, 8
        $region48: #{tpu_custom_call.1} parent=31 // pred_fallthru
          _
      $region32: #{tpu_custom_call.1} parent=5 // pred_fallthru
        _
      %p718 = scmp.le.s32.totalorder 2, %s21
      // Predicated region
      $region49: #{tpu_custom_call.1} parent=5 // pred_check
        %p719 = pneg %p718
      $region50: #{tpu_custom_call.1} parent=5 // pred_check_branch
        %721 = sbr.rel (%p719) target = $region52
      $region51: #{tpu_custom_call.1} parent=5 // pred_region
        %s722 = ssub.s32 %s21, 2
        // Predicated region
        $region53: #{tpu_custom_call.1} parent=51 // pred_check
          %p723 = pneg %p118
        $region54: #{tpu_custom_call.1} parent=51 // pred_check_branch
          %725 = sbr.rel (%p723) target = $region56
        $region55: #{tpu_custom_call.1} parent=51 // pred_region
          %s726 = sand.u32 %s103, 1
          %s727 = scalar_lea.sflag [#allocation4], %s726
          %s728 = sand.u32 %s103, 1
          %s729 = smul.addr %s728, 64
          %s730 = scalar_lea.vmem [#allocation7], %s729
          %732 = dma.done %s727, 1024
        $region56: #{tpu_custom_call.1} parent=51 // pred_fallthru
          _
        // Predicated region
        $region57: #{tpu_custom_call.1} parent=51 // pred_check
          %p733 = pneg %p144
        $region58: #{tpu_custom_call.1} parent=51 // pred_check_branch
          %735 = sbr.rel (%p733) target = $region60
        $region59: #{tpu_custom_call.1} parent=51 // pred_region
          %s736 = sand.u32 %s129, 1
          %s737 = scalar_lea.sflag [#allocation9], %s736
          %s738 = sand.u32 %s129, 1
          %s739 = smul.addr %s738, 128
          %s740 = scalar_lea.vmem [#allocation8], %s739
          %742 = dma.done %s737, 2048
        $region60: #{tpu_custom_call.1} parent=51 // pred_fallthru
          _
      $region52: #{tpu_custom_call.1} parent=5 // pred_fallthru
        _
    $region6: #{tpu_custom_call.1} parent=1 // loop_footer
      %s25 = sadd.s32 1, %s21
    $region7: #{tpu_custom_call.1} parent=1 // loop_footer_branch
      %20 = sbr.rel target = $region3
    $region8: #{tpu_custom_call.1} parent=1 // loop_exit
      _
    %743 = vsyncpa [#allocation3], 1
    %s744 = scalar_lea.sflag [#allocation3], 1
    %745 = vsyncpa %s744, 1
    %746 = vsyncpa [#allocation6], 1
    %747 = vsyncpa [#allocation4], 1
    %s748 = scalar_lea.sflag [#allocation4], 1
    %749 = vsyncpa %s748, 1
    %750 = vsyncpa [#allocation9], 1
    %s751 = scalar_lea.sflag [#allocation9], 1
    %752 = vsyncpa %s751, 1

</llo_original>
